<compile_context>
chip_gen: v5e
topology: v5e:2x2
jax: 0.10.0
libtpu: 0.0.40
codegen_flags: <defaults>
</compile_context>

<pallas_src>
import jax
import jax.numpy as jnp
from jax.experimental import pallas as pl
from jax.experimental.pallas import tpu as pltpu

_LANE = 128                         # vreg lane width (fast axis)
_TM_ALIGN = 32                      # sublane-safe row multiple (f32/bf16/int8)
_BLOCK_BYTES = 4 * 1024 * 1024      # target bytes per block buffer (~4 MiB)
_VMEM_LIMIT = 48 * 1024 * 1024      # fits v7x (64 MiB phys); raises v5e/v6e default


def _round_up(a, b):
    return -(-a // b) * b


def _h_swish_kernel(x_ref, o_ref):
    # Load in native dtype, compute in f32 in-register, store in native dtype.
    x = x_ref[...].astype(jnp.float32)
    y = x * jnp.clip(x + 3.0, 0.0, 6.0) * (1.0 / 6.0)
    o_ref[...] = y.astype(o_ref.dtype)


def h_swish(x):
    """Elementwise h_swish on a tensor of any shape (e.g. NCHW); shape/dtype preserving."""
    orig_shape = x.shape
    dtype = x.dtype
    total = x.size
    itemsize = jnp.dtype(dtype).itemsize

    # Lane-dense layout: flatten to (rows, 128). Pad only the sub-128 tail
    # (no-op when total % 128 == 0, the common case for conv feature maps).
    rows = pl.cdiv(total, _LANE)
    padded_total = rows * _LANE
    xf = jnp.ravel(x)
    if padded_total != total:
        xf = jnp.pad(xf, (0, padded_total - total))
    x2 = xf.reshape(rows, _LANE)

    # Rows per grid step: largest multiple of 32 keeping a block <= ~4 MiB
    # (dtype-aware), with >= 2 grid steps when the tensor is large enough so
    # dimension_semantics=("parallel",) can split work across v7x's 2 TCs.
    max_tm = max(_TM_ALIGN,
                 (_BLOCK_BYTES // (_LANE * itemsize)) // _TM_ALIGN * _TM_ALIGN)
    if rows <= 2 * _TM_ALIGN:
        tm = rows                                   # single full-extent block
    else:
        tm = min(max_tm, _round_up(pl.cdiv(rows, 2), _TM_ALIGN))

    grid = (pl.cdiv(rows, tm),)                     # ragged last block is fine

    y2 = pl.pallas_call(
        _h_swish_kernel,
        grid=grid,
        in_specs=[pl.BlockSpec((tm, _LANE), lambda i: (i, 0))],
        out_specs=pl.BlockSpec((tm, _LANE), lambda i: (i, 0)),
        out_shape=jax.ShapeDtypeStruct((rows, _LANE), dtype),
        compiler_params=pltpu.CompilerParams(
            dimension_semantics=("parallel",),      # megacore-splittable on v7x
            vmem_limit_bytes=_VMEM_LIMIT,
        ),
    )(x2)

    if padded_total != total:
        return y2.reshape(-1)[:total].reshape(orig_shape)
    return y2.reshape(orig_shape)


if __name__ == "__main__":
    key = jax.random.PRNGKey(0)
    # NCHW input, like the PyTorch module would receive.
    x = jax.random.normal(key, (2, 4, 16, 16), jnp.float32) * 4.0

    forward = jax.jit(h_swish)
    y = forward(x)
    jax.block_until_ready(y)

    # Reference: x * relu6(x + 3) / 6
    ref = x * jnp.clip(x + 3.0, 0.0, 6.0) / 6.0
    assert y.shape == x.shape and y.dtype == x.dtype, (y.shape, y.dtype)
    assert bool(jnp.all(jnp.isfinite(y)))
    assert bool(jnp.allclose(y, ref, atol=1e-6, rtol=1e-6)), float(jnp.max(jnp.abs(y - ref)))

    # Secondary check: native bf16 I/O path (in-kernel up/down cast).
    xb = x.astype(jnp.bfloat16)
    yb = jax.jit(h_swish)(xb)
    jax.block_until_ready(yb)
    refb = (xb.astype(jnp.float32) * jnp.clip(xb.astype(jnp.float32) + 3.0, 0.0, 6.0) / 6.0)
    assert yb.dtype == jnp.bfloat16
    assert bool(jnp.allclose(yb.astype(jnp.float32), refb, atol=1e-1, rtol=2e-2))

    print("KERNEL_OK")
</pallas_src>

<mosaic_0001>
module attributes {stable_mosaic.version = 11 : i64} {
  func.func @_h_swish_kernel(%arg0: i32, %arg1: memref<16x128xf32, #tpu.memory_space<vmem>>, %arg2: memref<16x128xf32, #tpu.memory_space<vmem>>) attributes {dimension_semantics = [#tpu.dimension_semantics<parallel>], iteration_bounds = array<i64: 1>, scalar_prefetch = 0 : i64, scratch_operands = 0 : i64, tpu.core_type = #tpu.core_type<tc>, window_params = [{transform_indices = @transform_0, window_bounds = array<i64: 16, 128>}, {transform_indices = @transform_1, window_bounds = array<i64: 16, 128>}]} {
    %c0 = arith.constant 0 : index
    %c0_0 = arith.constant 0 : index
    %0 = vector.load %arg1[%c0, %c0_0] : memref<16x128xf32, #tpu.memory_space<vmem>>, vector<16x128xf32>
    %cst = arith.constant 3.000000e+00 : f32
    %1 = vector.broadcast %cst : f32 to vector<16x128xf32>
    %2 = arith.addf %0, %1 : vector<16x128xf32>
    %cst_1 = arith.constant 0.000000e+00 : f32
    %cst_2 = arith.constant 6.000000e+00 : f32
    %3 = vector.broadcast %cst_1 : f32 to vector<16x128xf32>
    %4 = arith.maximumf %3, %2 : vector<16x128xf32>
    %5 = vector.broadcast %cst_2 : f32 to vector<16x128xf32>
    %6 = arith.minimumf %5, %4 : vector<16x128xf32>
    %7 = arith.mulf %0, %6 : vector<16x128xf32>
    %cst_3 = arith.constant 0.166666672 : f32
    %8 = vector.broadcast %cst_3 : f32 to vector<16x128xf32>
    %9 = arith.mulf %7, %8 : vector<16x128xf32>
    %c0_4 = arith.constant 0 : index
    %c0_5 = arith.constant 0 : index
    %10 = vector.load %arg2[%c0_4, %c0_5] : memref<16x128xf32, #tpu.memory_space<vmem>>, vector<16x128xf32>
    tpu.vector_store %arg2[%c0_4, %c0_5], %9 {strides = array<i32>} : memref<16x128xf32, #tpu.memory_space<vmem>>, vector<16x128xf32>,
    return
  }
  func.func @transform_0(%arg0: i32) -> (i32, i32) {
    %c0_i32 = arith.constant 0 : i32
    %c0_i32_0 = arith.constant 0 : i32
    return %arg0, %c0_i32 : i32, i32
  }
  func.func @transform_1(%arg0: i32) -> (i32, i32) {
    %c0_i32 = arith.constant 0 : i32
    %c0_i32_0 = arith.constant 0 : i32
    return %arg0, %c0_i32 : i32, i32
  }
}

</mosaic_0001>

<llo_original>
// kernel: h_swish.1
$region0: #{h_swish.1}
  #allocation0 [shape = 'u32[]', space=smem, size = 0x4, offset = 0x4, fixed_abs, tag = 'smem constant byte address 0x4 - core index']
  #allocation1 [shape = 'u32[72,128]{1,0:T(1,128)}', space=vmem, size = 0x9000, scoped, tag = 'internal scratch']
  %s0 = inlined_call_operand.vmem [shape: f32[16,128], index: 0, kind: input, shape index: {}]
  %s1 = inlined_call_operand.vmem [shape: f32[16,128], index: 1, kind: output, shape index: {}]
  %s2 = sld [smem:[#allocation0]]
  $region14: #{h_swish.1} parent=0
    _
  %s4 = ssub.s32 1, %s2
  %s5 = scalar_select 0, %s4, %s2
  // Predicated region
  $region2: #{h_swish.1} parent=0 // pred_check
    _
  $region3: #{h_swish.1} parent=0 // pred_check_branch
    %7 = sbr.rel (0) target = $region5
  $region4: #{h_swish.1} parent=0 // pred_region
    _
  $region5: #{h_swish.1} parent=0 // pred_fallthru
    _
  %v8 = vld [vmem:[%s0] sm:$0xff]
  %v9 = vld [vmem:[%s0 + $0x8] sm:$0xff]
  %v10 = vadd.f32 %v8, 3.0
  %v11 = vadd.f32 %v9, 3.0
  %v12 = vmax.f32 %v10, 0.0
  %v13 = vmax.f32 %v11, 0.0
  %v14 = vmin.f32 %v12, 6.0
  %v15 = vmin.f32 %v13, 6.0
  %v16 = vmul.f32 %v8, %v14
  %v17 = vmul.f32 %v9, %v15
  %v18 = vmul.f32 %v16, 0.16666667
  %v19 = vmul.f32 %v17, 0.16666667
  %20 = vst [vmem:[%s1] sm:$0xff] %v18
  %21 = vst [vmem:[%s1 + $0x8] sm:$0xff] %v19
  // Predicated region
  $region6: #{h_swish.1} parent=0 // pred_check
    _
  $region7: #{h_swish.1} parent=0 // pred_check_branch
    %23 = sbr.rel (0) target = $region9
  $region8: #{h_swish.1} parent=0 // pred_region
    _
  $region9: #{h_swish.1} parent=0 // pred_fallthru
    _
  // Predicated region
  $region10: #{h_swish.1} parent=0 // pred_check
    _
  $region11: #{h_swish.1} parent=0 // pred_check_branch
    %25 = sbr.rel (0) target = $region13
  $region12: #{h_swish.1} parent=0 // pred_region
    _
  $region13: #{h_swish.1} parent=0 // pred_fallthru
    _

</llo_original>
